<compile_context>
chip_gen: v6e
topology: v6e:2x2x1
jax: 0.10.0
libtpu: 0.0.40
codegen_flags: <defaults>
</compile_context>

<pallas_src>
import functools

import jax
import jax.numpy as jnp
from jax.experimental import pallas as pl
from jax.experimental.pallas import tpu as pltpu

_LANE = 128          # lane-dense padded width for the hidden layers
_DEFAULT_TILE = 1024  # target batch tile (rows per grid step)


def _icritic_kernel(x_ref, w1_ref, wcat_ref, bcat_ref, out_ref):
    """Fused 4-layer MLP: 3x (matmul + bias + ReLU) + final matmul + bias.

    Weights are mxu_dtype (bf16 by default, MXU-native); accumulation, bias add
    and ReLU are f32.  Only the out_dim valid output columns are stored.
    """
    mxu = w1_ref.dtype
    out_dim = out_ref.shape[-1]
    H = _LANE
    b = bcat_ref[...]                      # (4, 128) f32, rows = b1..b4 padded

    h = jnp.dot(x_ref[...].astype(mxu), w1_ref[...],
                preferred_element_type=jnp.float32)
    h = jnp.maximum(h + b[0:1, :], 0.0)

    h = jnp.dot(h.astype(mxu), wcat_ref[:, 0:H],
                preferred_element_type=jnp.float32)
    h = jnp.maximum(h + b[1:2, :], 0.0)

    h = jnp.dot(h.astype(mxu), wcat_ref[:, H:2 * H],
                preferred_element_type=jnp.float32)
    h = jnp.maximum(h + b[2:3, :], 0.0)

    out = jnp.dot(h.astype(mxu), wcat_ref[:, 2 * H:3 * H],
                  preferred_element_type=jnp.float32) + b[3:4, :]
    # Compact store: only the valid out_dim columns hit HBM.
    out_ref[...] = out[:, :out_dim].astype(out_ref.dtype)


def _round_up(n, m):
    return -(-n // m) * m


def _pick_batch_tile(batch, target=_DEFAULT_TILE):
    """Multiple of 8, <= target, >= 2 grid steps when batch >= 16 (v7x megacore)."""
    tile = min(int(target), _round_up(batch, 8))
    if batch >= 16 and tile >= batch:
        tile = _round_up(-(-batch // 2), 8)   # ceil(batch/2) rounded up to 8
    return max(8, tile)


def _pad_to(a, shape):
    """Zero-pad array `a` up to `shape` (trailing pads only)."""
    return jnp.pad(a, [(0, s - d) for s, d in zip(shape, a.shape)])


@functools.partial(jax.jit, static_argnames=("batch_tile", "mxu_dtype"))
def icritic_forward(x, params, batch_tile=None, mxu_dtype=jnp.bfloat16):
    """Run the fused ICritic MLP. x: (B, input_space) f32 -> (B, out_dim) f32."""
    (w1, b1), (w2, b2), (w3, b3), (w4, b4) = params
    B, in_dim = x.shape
    out_dim = w4.shape[1]
    H = _LANE
    assert out_dim <= H, "out_dim > 128 not supported by this kernel"

    if batch_tile is None:
        batch_tile = _pick_batch_tile(B)
    assert batch_tile % 8 == 0, "batch_tile must be a multiple of 8 (f32 sublane)"

    # Lane-dense, zero-padded parameters.  Padding rows/cols are zero and
    # ReLU(0)=0, so the math is identical to the unpadded MLP.
    w1p = _pad_to(w1, (in_dim, H)).astype(mxu_dtype)                 # (in, 128)
    wcat = jnp.concatenate(
        [_pad_to(w2, (H, H)), _pad_to(w3, (H, H)), _pad_to(w4, (H, H))],
        axis=1).astype(mxu_dtype)                                    # (128, 384)
    bcat = jnp.concatenate(
        [_pad_to(b, (1, H)) for b in (b1, b2, b3, b4)],
        axis=0).astype(jnp.float32)                                  # (4, 128)

    # Ragged B: no wrapper-side pad.  The last tile may be partial; garbage
    # input rows only affect their own (masked-off) output rows.
    n_steps = pl.cdiv(B, batch_tile)
    grid = (n_steps,)

    def rep(shape):
        # Replicated block: constant index_map -> DMA'd once, stays in VMEM.
        return pl.BlockSpec(shape, lambda i: (0, 0))

    in_specs = [
        pl.BlockSpec((batch_tile, in_dim), lambda i: (i, 0)),   # x tile
        rep(w1p.shape), rep(wcat.shape), rep(bcat.shape),
    ]
    out_specs = pl.BlockSpec((batch_tile, out_dim), lambda i: (i, 0))

    flops = 2 * B * (in_dim * H + 3 * H * H)
    param_bytes = sum(int(a.size) * a.dtype.itemsize for a in (w1p, wcat, bcat))
    bytes_accessed = (int(x.size) * x.dtype.itemsize
                      + B * out_dim * 4 + param_bytes)

    out = pl.pallas_call(
        _icritic_kernel,
        out_shape=jax.ShapeDtypeStruct((B, out_dim), jnp.float32),
        grid_spec=pltpu.PrefetchScalarGridSpec(
            num_scalar_prefetch=0,
            grid=grid,
            in_specs=in_specs,
            out_specs=out_specs,
        ),
        compiler_params=pltpu.CompilerParams(
            dimension_semantics=("parallel",),
        ),
        cost_estimate=pl.CostEstimate(
            flops=flops, transcendentals=0, bytes_accessed=bytes_accessed),
    )(x, w1p, wcat, bcat)

    return out


def init_icritic_params(key, input_space, output_space, dtype=jnp.float32):
    """Deterministic init mimicking PyTorch nn.Linear default (U[-1/sqrt(fan_in), +]).

    Weights are stored transposed vs. nn.Linear: W_i has shape (fan_in, fan_out)
    so the forward is h = relu(x @ W + b). Biases are (1, fan_out).
    """
    dims = [(input_space, 128), (128, 64), (64, 32), (32, output_space)]
    params = []
    for (fan_in, fan_out) in dims:
        key, kw, kb = jax.random.split(key, 3)
        bound = 1.0 / jnp.sqrt(jnp.array(fan_in, dtype))
        w = jax.random.uniform(kw, (fan_in, fan_out), dtype, -bound, bound)
        b = jax.random.uniform(kb, (1, fan_out), dtype, -bound, bound)
        params.append((w, b))
    return params


def icritic_reference(x, params):
    """Plain-JAX (f32) reference for correctness checking."""
    (w1, b1), (w2, b2), (w3, b3), (w4, b4) = params
    h = jnp.maximum(x @ w1 + b1, 0.0)
    h = jnp.maximum(h @ w2 + b2, 0.0)
    h = jnp.maximum(h @ w3 + b3, 0.0)
    return h @ w4 + b4


if __name__ == "__main__":
    key = jax.random.PRNGKey(0)
    key, kx = jax.random.split(key)

    batch = 512          # -> auto tile 256, 2 grid steps (both TCs on v7x)
    input_space = 32     # e.g. flattened traffic-light state vector
    output_space = 8     # e.g. number of discrete phases (critic values)

    x = jax.random.normal(kx, (batch, input_space), jnp.float32)
    params = init_icritic_params(key, input_space, output_space)

    ref = icritic_reference(x, params)

    # Aligned batch.
    out = jax.block_until_ready(icritic_forward(x, params))
    assert out.shape == (batch, output_space), out.shape
    # bf16 MXU operands -> loosened tolerance vs the f32 reference.
    assert jnp.allclose(out, ref, atol=5e-2, rtol=5e-2), "mismatch vs reference"

    # Ragged batch (exercises the partial last tile / masked output store path).
    xr = x[:300]
    outr = jax.block_until_ready(icritic_forward(xr, params))
    assert outr.shape == (300, output_space), outr.shape
    assert jnp.allclose(outr, ref[:300], atol=5e-2, rtol=5e-2), "ragged mismatch"

    print("KERNEL_OK")
</pallas_src>

<mosaic_0001>
module attributes {stable_mosaic.version = 11 : i64} {
  func.func @_icritic_kernel(%arg0: i32, %arg1: memref<256x32xf32, #tpu.memory_space<vmem>>, %arg2: memref<32x128xbf16, #tpu.memory_space<vmem>>, %arg3: memref<128x384xbf16, #tpu.memory_space<vmem>>, %arg4: memref<4x128xf32, #tpu.memory_space<vmem>>, %arg5: memref<256x8xf32, #tpu.memory_space<vmem>>) attributes {dimension_semantics = [#tpu.dimension_semantics<parallel>], iteration_bounds = array<i64: 2>, scalar_prefetch = 0 : i64, scratch_operands = 0 : i64, tpu.core_type = #tpu.core_type<tc>, window_params = [{transform_indices = @transform_0, window_bounds = array<i64: 256, 32>}, {pipeline_mode = #tpu.pipeline_mode<synchronous>, transform_indices = @transform_1, window_bounds = array<i64: 32, 128>}, {pipeline_mode = #tpu.pipeline_mode<synchronous>, transform_indices = @transform_2, window_bounds = array<i64: 128, 384>}, {pipeline_mode = #tpu.pipeline_mode<synchronous>, transform_indices = @transform_3, window_bounds = array<i64: 4, 128>}, {transform_indices = @transform_4, window_bounds = array<i64: 256, 8>}]} {
    %c0 = arith.constant 0 : index
    %c0_0 = arith.constant 0 : index
    %0 = vector.load %arg4[%c0, %c0_0] : memref<4x128xf32, #tpu.memory_space<vmem>>, vector<4x128xf32>
    %c0_1 = arith.constant 0 : index
    %c0_2 = arith.constant 0 : index
    %1 = vector.load %arg1[%c0_1, %c0_2] : memref<256x32xf32, #tpu.memory_space<vmem>>, vector<256x32xf32>
    %2 = arith.truncf %1 : vector<256x32xf32> to vector<256x32xbf16>
    %c0_3 = arith.constant 0 : index
    %c0_4 = arith.constant 0 : index
    %3 = vector.load %arg2[%c0_3, %c0_4] : memref<32x128xbf16, #tpu.memory_space<vmem>>, vector<32x128xbf16>
    %cst = arith.constant dense<0.000000e+00> : vector<256x128xf32>
    %4 = tpu.matmul %2, %3, %cst {dimension_numbers = #tpu.dot_dimension_numbers<[1], [0], [0], [1], [0, 0, 1, 1], [], []>} : vector<256x32xbf16>, vector<32x128xbf16>, vector<256x128xf32> -> vector<256x128xf32>
    %5 = vector.extract_strided_slice %0 {offsets = [0, 0], sizes = [1, 128], strides = [1, 1]} : vector<4x128xf32> to vector<1x128xf32>
    %6 = vector.broadcast %5 : vector<1x128xf32> to vector<256x128xf32>
    %7 = arith.addf %4, %6 : vector<256x128xf32>
    %cst_5 = arith.constant 0.000000e+00 : f32
    %8 = vector.broadcast %cst_5 : f32 to vector<256x128xf32>
    %9 = arith.maximumf %7, %8 : vector<256x128xf32>
    %10 = arith.truncf %9 : vector<256x128xf32> to vector<256x128xbf16>
    %c0_6 = arith.constant 0 : index
    %c0_7 = arith.constant 0 : index
    %11 = vector.load %arg3[%c0_6, %c0_7] : memref<128x384xbf16, #tpu.memory_space<vmem>>, vector<128x128xbf16>
    %cst_8 = arith.constant dense<0.000000e+00> : vector<256x128xf32>
    %12 = tpu.matmul %10, %11, %cst_8 {dimension_numbers = #tpu.dot_dimension_numbers<[1], [0], [0], [1], [0, 0, 1, 1], [], []>} : vector<256x128xbf16>, vector<128x128xbf16>, vector<256x128xf32> -> vector<256x128xf32>
    %13 = vector.extract_strided_slice %0 {offsets = [1, 0], sizes = [1, 128], strides = [1, 1]} : vector<4x128xf32> to vector<1x128xf32>
    %14 = vector.broadcast %13 : vector<1x128xf32> to vector<256x128xf32>
    %15 = arith.addf %12, %14 : vector<256x128xf32>
    %cst_9 = arith.constant 0.000000e+00 : f32
    %16 = vector.broadcast %cst_9 : f32 to vector<256x128xf32>
    %17 = arith.maximumf %15, %16 : vector<256x128xf32>
    %18 = arith.truncf %17 : vector<256x128xf32> to vector<256x128xbf16>
    %c0_10 = arith.constant 0 : index
    %c128 = arith.constant 128 : index
    %19 = vector.load %arg3[%c0_10, %c128] : memref<128x384xbf16, #tpu.memory_space<vmem>>, vector<128x128xbf16>
    %cst_11 = arith.constant dense<0.000000e+00> : vector<256x128xf32>
    %20 = tpu.matmul %18, %19, %cst_11 {dimension_numbers = #tpu.dot_dimension_numbers<[1], [0], [0], [1], [0, 0, 1, 1], [], []>} : vector<256x128xbf16>, vector<128x128xbf16>, vector<256x128xf32> -> vector<256x128xf32>
    %21 = vector.extract_strided_slice %0 {offsets = [2, 0], sizes = [1, 128], strides = [1, 1]} : vector<4x128xf32> to vector<1x128xf32>
    %22 = vector.broadcast %21 : vector<1x128xf32> to vector<256x128xf32>
    %23 = arith.addf %20, %22 : vector<256x128xf32>
    %cst_12 = arith.constant 0.000000e+00 : f32
    %24 = vector.broadcast %cst_12 : f32 to vector<256x128xf32>
    %25 = arith.maximumf %23, %24 : vector<256x128xf32>
    %26 = arith.truncf %25 : vector<256x128xf32> to vector<256x128xbf16>
    %c0_13 = arith.constant 0 : index
    %c256 = arith.constant 256 : index
    %27 = vector.load %arg3[%c0_13, %c256] : memref<128x384xbf16, #tpu.memory_space<vmem>>, vector<128x128xbf16>
    %cst_14 = arith.constant dense<0.000000e+00> : vector<256x128xf32>
    %28 = tpu.matmul %26, %27, %cst_14 {dimension_numbers = #tpu.dot_dimension_numbers<[1], [0], [0], [1], [0, 0, 1, 1], [], []>} : vector<256x128xbf16>, vector<128x128xbf16>, vector<256x128xf32> -> vector<256x128xf32>
    %29 = vector.extract_strided_slice %0 {offsets = [3, 0], sizes = [1, 128], strides = [1, 1]} : vector<4x128xf32> to vector<1x128xf32>
    %30 = vector.broadcast %29 : vector<1x128xf32> to vector<256x128xf32>
    %31 = arith.addf %28, %30 : vector<256x128xf32>
    %32 = vector.extract_strided_slice %31 {offsets = [0, 0], sizes = [256, 8], strides = [1, 1]} : vector<256x128xf32> to vector<256x8xf32>
    %c0_15 = arith.constant 0 : index
    %c0_16 = arith.constant 0 : index
    %33 = vector.load %arg5[%c0_15, %c0_16] : memref<256x8xf32, #tpu.memory_space<vmem>>, vector<256x8xf32>
    tpu.vector_store %arg5[%c0_15, %c0_16], %32 {strides = array<i32>} : memref<256x8xf32, #tpu.memory_space<vmem>>, vector<256x8xf32>,
    return
  }
  func.func @transform_0(%arg0: i32) -> (i32, i32) {
    %c0_i32 = arith.constant 0 : i32
    %c0_i32_0 = arith.constant 0 : i32
    return %arg0, %c0_i32 : i32, i32
  }
  func.func @transform_1(%arg0: i32) -> (i32, i32) {
    %c0_i32 = arith.constant 0 : i32
    %c0_i32_0 = arith.constant 0 : i32
    %c0_i32_1 = arith.constant 0 : i32
    return %c0_i32, %c0_i32_0 : i32, i32
  }
  func.func @transform_2(%arg0: i32) -> (i32, i32) {
    %c0_i32 = arith.constant 0 : i32
    %c0_i32_0 = arith.constant 0 : i32
    %c0_i32_1 = arith.constant 0 : i32
    return %c0_i32, %c0_i32_0 : i32, i32
  }
  func.func @transform_3(%arg0: i32) -> (i32, i32) {
    %c0_i32 = arith.constant 0 : i32
    %c0_i32_0 = arith.constant 0 : i32
    %c0_i32_1 = arith.constant 0 : i32
    return %c0_i32, %c0_i32_0 : i32, i32
  }
  func.func @transform_4(%arg0: i32) -> (i32, i32) {
    %c0_i32 = arith.constant 0 : i32
    %c0_i32_0 = arith.constant 0 : i32
    return %arg0, %c0_i32 : i32, i32
  }
}

</mosaic_0001>

<llo_original>
// kernel: icritic_forward.1
$region0: #{icritic_forward.1}
  #allocation0 [shape = 'u32[]', space=smem, size = 0x4, offset = 0x4, fixed_abs, tag = 'smem constant byte address 0x4 - core index']
  #allocation1 [shape = 'u32[144,128]{1,0:T(1,128)}', space=vmem, size = 0x12000, scoped, tag = 'internal scratch']
  %s0 = inlined_call_operand.vmem [shape: f32[512,32], index: 0, kind: input, shape index: {}]
  %s1 = inlined_call_operand.vmem [shape: bf16[32,128], index: 1, kind: input, shape index: {}]
  %s2 = inlined_call_operand.vmem [shape: bf16[128,384], index: 2, kind: input, shape index: {}]
  %s3 = inlined_call_operand.vmem [shape: f32[4,128], index: 3, kind: input, shape index: {}]
  %s4 = inlined_call_operand.vmem [shape: f32[512,8], index: 4, kind: output, shape index: {}]
  %s5 = sld [smem:[#allocation0]]
  $region49: #{icritic_forward.1} parent=0
    _
  %s7 = ssub.s32 1, %s5
  %s8 = scalar_select 0, %s7, %s5
  loop: start=0, step=1, limit=4
  $region2: #{icritic_forward.1} parent=0 // loop_pre_header
    _
  $region3: #{icritic_forward.1} parent=0 // loop_header
    %s10 = sphi 0, %s14
    %p11 = scmp.ge.s32.totalorder %s10, 4
    %s20 = sphi 0, %s22
    %s23 = sphi 0, %s20
    %s24 = sphi 0, %s23
    %s40 = sphi 0, %s24
    %s44 = sphi 0, %s44
    %s46 = sphi 0, %s44
    %s47 = sphi 0, %s46
    %s61 = sphi 0, %s47
    %s65 = sphi 0, %s65
    %s67 = sphi 0, %s65
    %s68 = sphi 0, %s67
    %s82 = sphi 0, %s68
    %s86 = sphi 0, %s86
    %s88 = sphi 0, %s86
    %s89 = sphi 0, %s88
    %s103 = sphi 0, %s89
    %s109 = sphi 0, %s111
    %s112 = sphi 0, %s109
    %s113 = sphi 0, %s112
    %s129 = sphi 0, %s113
  $region4: #{icritic_forward.1} parent=0 // loop_header_branch
    %13 = sbr.rel (%p11) target = $region8
  $region5: #{icritic_forward.1} parent=0 // loop_body
    %s15 = ssub.s32 %s10, 1
    %s16 = ssub.s32 %s10, 2
    %s17 = sadd.s32 %s10, 1
    %s18 = ssub.s32 %s10, %s17
    %p19 = scmp.eq.s32.totalorder %s18, 0
    %s21 = sadd.s32 %s20, 1
    %s22 = scalar_select %p19, %s20, %s21
    %p25 = pneg %p19
    %p26 = scmp.eq.s32.totalorder %s10, 1
    %p27 = por %p25, %p26
    %p28 = scmp.ne.s32.totalorder %s20, %s23
    %p29 = scmp.eq.s32.totalorder %s10, 0
    %p30 = por %p28, %p29
    %p31 = scmp.ne.s32.totalorder %s20, %s23
    %p32 = scmp.eq.s32.totalorder %s15, 1
    %p33 = por %p31, %p32
    %p34 = scmp.ne.s32.totalorder %s23, %s24
    %p35 = scmp.eq.s32.totalorder %s15, 0
    %p36 = por %p34, %p35
    %p37 = scmp.ne.s32.totalorder %s23, %s24
    %p38 = scmp.eq.s32.totalorder %s16, 1
    %p39 = por %p37, %p38
    %p41 = scmp.ne.s32.totalorder %s24, %s40
    %p42 = scmp.eq.s32.totalorder %s16, 0
    %p43 = por %p41, %p42
    %s45 = sadd.s32 %s44, 1
    %p48 = scmp.eq.s32.totalorder %s10, 1
    %p49 = scmp.ne.s32.totalorder %s44, %s46
    %p50 = scmp.eq.s32.totalorder %s10, 0
    %p51 = por %p49, %p50
    %p52 = scmp.ne.s32.totalorder %s44, %s46
    %p53 = scmp.eq.s32.totalorder %s15, 1
    %p54 = por %p52, %p53
    %p55 = scmp.ne.s32.totalorder %s46, %s47
    %p56 = scmp.eq.s32.totalorder %s15, 0
    %p57 = por %p55, %p56
    %p58 = scmp.ne.s32.totalorder %s46, %s47
    %p59 = scmp.eq.s32.totalorder %s16, 1
    %p60 = por %p58, %p59
    %p62 = scmp.ne.s32.totalorder %s47, %s61
    %p63 = scmp.eq.s32.totalorder %s16, 0
    %p64 = por %p62, %p63
    %s66 = sadd.s32 %s65, 1
    %p69 = scmp.eq.s32.totalorder %s10, 1
    %p70 = scmp.ne.s32.totalorder %s65, %s67
    %p71 = scmp.eq.s32.totalorder %s10, 0
    %p72 = por %p70, %p71
    %p73 = scmp.ne.s32.totalorder %s65, %s67
    %p74 = scmp.eq.s32.totalorder %s15, 1
    %p75 = por %p73, %p74
    %p76 = scmp.ne.s32.totalorder %s67, %s68
    %p77 = scmp.eq.s32.totalorder %s15, 0
    %p78 = por %p76, %p77
    %p79 = scmp.ne.s32.totalorder %s67, %s68
    %p80 = scmp.eq.s32.totalorder %s16, 1
    %p81 = por %p79, %p80
    %p83 = scmp.ne.s32.totalorder %s68, %s82
    %p84 = scmp.eq.s32.totalorder %s16, 0
    %p85 = por %p83, %p84
    %s87 = sadd.s32 %s86, 1
    %p90 = scmp.eq.s32.totalorder %s10, 1
    %p91 = scmp.ne.s32.totalorder %s86, %s88
    %p92 = scmp.eq.s32.totalorder %s10, 0
    %p93 = por %p91, %p92
    %p94 = scmp.ne.s32.totalorder %s86, %s88
    %p95 = scmp.eq.s32.totalorder %s15, 1
    %p96 = por %p94, %p95
    %p97 = scmp.ne.s32.totalorder %s88, %s89
    %p98 = scmp.eq.s32.totalorder %s15, 0
    %p99 = por %p97, %p98
    %p100 = scmp.ne.s32.totalorder %s88, %s89
    %p101 = scmp.eq.s32.totalorder %s16, 1
    %p102 = por %p100, %p101
    %p104 = scmp.ne.s32.totalorder %s89, %s103
    %p105 = scmp.eq.s32.totalorder %s16, 0
    %p106 = por %p104, %p105
    %s107 = ssub.s32 %s10, %s17
    %p108 = scmp.eq.s32.totalorder %s107, 0
    %s110 = sadd.s32 %s109, 1
    %s111 = scalar_select %p108, %s109, %s110
    %p114 = pneg %p108
    %p115 = scmp.eq.s32.totalorder %s10, 1
    %p116 = por %p114, %p115
    %p117 = scmp.ne.s32.totalorder %s109, %s112
    %p118 = scmp.eq.s32.totalorder %s10, 0
    %p119 = por %p117, %p118
    %p120 = scmp.ne.s32.totalorder %s109, %s112
    %p121 = scmp.eq.s32.totalorder %s15, 1
    %p122 = por %p120, %p121
    %p123 = scmp.ne.s32.totalorder %s112, %s113
    %p124 = scmp.eq.s32.totalorder %s15, 0
    %p125 = por %p123, %p124
    %p126 = scmp.ne.s32.totalorder %s112, %s113
    %p127 = scmp.eq.s32.totalorder %s16, 1
    %p128 = por %p126, %p127
    %p130 = scmp.ne.s32.totalorder %s113, %s129
    %p131 = scmp.eq.s32.totalorder %s16, 0
    %p132 = por %p130, %p131
    %p133 = scmp.le.s32.totalorder 1, %s10
    %p134 = scmp.lt.s32.totalorder %s10, 3
    %p135 = pnand %p133, %p134
    %p136 = pneg %p135
    // Predicated region
    $region9: #{icritic_forward.1} parent=5 // pred_check
      _
    $region10: #{icritic_forward.1} parent=5 // pred_check_branch
      %138 = sbr.rel (%p135) target = $region12
    $region11: #{icritic_forward.1} parent=5 // pred_region
      %s139 = ssub.s32 %s10, 1
      // Predicated region
      $region13: #{icritic_forward.1} parent=11 // pred_check
        %p140 = pneg %p57
      $region14: #{icritic_forward.1} parent=11 // pred_check_branch
        %142 = sbr.rel (%p140) target = $region16
      $region15: #{icritic_forward.1} parent=11 // pred_region
        _
      $region16: #{icritic_forward.1} parent=11 // pred_fallthru
        _
      // Predicated region
      $region17: #{icritic_forward.1} parent=11 // pred_check
        %p143 = pneg %p78
      $region18: #{icritic_forward.1} parent=11 // pred_check_branch
        %145 = sbr.rel (%p143) target = $region20
      $region19: #{icritic_forward.1} parent=11 // pred_region
        _
      $region20: #{icritic_forward.1} parent=11 // pred_fallthru
        _
      // Predicated region
      $region21: #{icritic_forward.1} parent=11 // pred_check
        %p146 = pneg %p99
      $region22: #{icritic_forward.1} parent=11 // pred_check_branch
        %148 = sbr.rel (%p146) target = $region24
      $region23: #{icritic_forward.1} parent=11 // pred_region
        _
      $region24: #{icritic_forward.1} parent=11 // pred_fallthru
        _
    $region12: #{icritic_forward.1} parent=5 // pred_fallthru
      _
    %p149 = scmp.lt.s32.totalorder %s10, 2
    // Predicated region
    $region25: #{icritic_forward.1} parent=5 // pred_check
      %p150 = pneg %p149
    $region26: #{icritic_forward.1} parent=5 // pred_check_branch
      %152 = sbr.rel (%p150) target = $region28
    $region27: #{icritic_forward.1} parent=5 // pred_region
      // Predicated region
      $region29: #{icritic_forward.1} parent=27 // pred_check
        %p153 = pneg %p30
      $region30: #{icritic_forward.1} parent=27 // pred_check_branch
        %155 = sbr.rel (%p153) target = $region32
      $region31: #{icritic_forward.1} parent=27 // pred_region
        %s156 = smul.u32 32, %s10
        %p157 = scmp.lt.s32.totalorder %s156, 63
        %s158 = scalar_select %p157, %s156, 63
        %s159 = smul.addr %s158, 8
        %s160 = scalar_lea.vmem %s0, %s159
        %s161 = smul.u32 32, %s10
      $region32: #{icritic_forward.1} parent=27 // pred_fallthru
        _
    $region28: #{icritic_forward.1} parent=5 // pred_fallthru
      _
    %p162 = scmp.le.s32.totalorder 1, %s10
    %p163 = scmp.lt.s32.totalorder %s10, 3
    %p164 = pnand %p162, %p163
    %p165 = pneg %p164
    // Predicated region
    $region33: #{icritic_forward.1} parent=5 // pred_check
      _
    $region34: #{icritic_forward.1} parent=5 // pred_check_branch
      %167 = sbr.rel (%p164) target = $region36
    $region35: #{icritic_forward.1} parent=5 // pred_region
      %s168 = ssub.s32 %s10, 1
      %s169 = smul.u32 32, %s15
      %p170 = scmp.lt.s32.totalorder %s169, 63
      %s171 = scalar_select %p170, %s169, 63
      %s172 = smul.addr %s171, 8
      %s173 = scalar_lea.vmem %s0, %s172
      %p174 = pneg %p36
      %p175 = pneg %p33
      %p176 = pneg %p57
      %p177 = pneg %p54
      %p178 = pneg %p78
      %p179 = pneg %p75
      %p180 = pneg %p99
      %p181 = pneg %p96
      %p182 = pneg %p125
      %p183 = pneg %p122
      %s184 = smul.u32 32, %s15
      %p185 = scmp.lt.s32.totalorder %s184, 63
      %s186 = scalar_select %p185, %s184, 63
      %s187 = smul.addr %s186, 8
      %s188 = scalar_lea.vmem %s4, %s187
      %s189 = smul.u32 32, %s15
      %p190 = scmp.lt.s32.totalorder %s189, 63
      %s191 = scalar_select %p190, %s189, 63
      %s192 = smul.addr %s191, 8
      %s193 = scalar_lea.vmem %s0, %s192
      %s194 = smul.u32 32, %s15
      %s195 = smul.u32 32, %s15
      %p196 = scmp.lt.s32.totalorder %s195, 63
      %s197 = scalar_select %p196, %s195, 63
      %s198 = smul.addr %s197, 8
      %s199 = scalar_lea.vmem %s4, %s198
      %s200 = smul.u32 32, %s15
      %v202 = vld [vmem:[%s3] sm:$0xf]
      %v203 = vld [vmem:[%s193] sm:$0xff]
      %v204 = vld [vmem:[%s193 + $0x8] sm:$0xff]
      %v205 = vld [vmem:[%s193 + $0x10] sm:$0xff]
      %v206 = vld [vmem:[%s193 + $0x18] sm:$0xff]
      %v207 = vld [vmem:[%s193 + $0x20] sm:$0xff]
      %v208 = vld [vmem:[%s193 + $0x28] sm:$0xff]
      %v209 = vld [vmem:[%s193 + $0x30] sm:$0xff]
      %v210 = vld [vmem:[%s193 + $0x38] sm:$0xff]
      %v211 = vld [vmem:[%s193 + $0x40] sm:$0xff]
      %v212 = vld [vmem:[%s193 + $0x48] sm:$0xff]
      %v213 = vld [vmem:[%s193 + $0x50] sm:$0xff]
      %v214 = vld [vmem:[%s193 + $0x58] sm:$0xff]
      %v215 = vld [vmem:[%s193 + $0x60] sm:$0xff]
      %v216 = vld [vmem:[%s193 + $0x68] sm:$0xff]
      %v217 = vld [vmem:[%s193 + $0x70] sm:$0xff]
      %v218 = vld [vmem:[%s193 + $0x78] sm:$0xff]
      %v219 = vld [vmem:[%s193 + $0x80] sm:$0xff]
      %v220 = vld [vmem:[%s193 + $0x88] sm:$0xff]
      %v221 = vld [vmem:[%s193 + $0x90] sm:$0xff]
      %v222 = vld [vmem:[%s193 + $0x98] sm:$0xff]
      %v223 = vld [vmem:[%s193 + $0xa0] sm:$0xff]
      %v224 = vld [vmem:[%s193 + $0xa8] sm:$0xff]
      %v225 = vld [vmem:[%s193 + $0xb0] sm:$0xff]
      %v226 = vld [vmem:[%s193 + $0xb8] sm:$0xff]
      %v227 = vld [vmem:[%s193 + $0xc0] sm:$0xff]
      %v228 = vld [vmem:[%s193 + $0xc8] sm:$0xff]
      %v229 = vld [vmem:[%s193 + $0xd0] sm:$0xff]
      %v230 = vld [vmem:[%s193 + $0xd8] sm:$0xff]
      %v231 = vld [vmem:[%s193 + $0xe0] sm:$0xff]
      %v232 = vld [vmem:[%s193 + $0xe8] sm:$0xff]
      %v233 = vld [vmem:[%s193 + $0xf0] sm:$0xff]
      %v234 = vld [vmem:[%s193 + $0xf8] sm:$0xff]
      %v235 = vpack.c.bf16 %v204, %v203
      %v236 = vpack.c.bf16 %v206, %v205
      %v237 = vpack.c.bf16 %v208, %v207
      %v238 = vpack.c.bf16 %v210, %v209
      %v239 = vpack.c.bf16 %v212, %v211
      %v240 = vpack.c.bf16 %v214, %v213
      %v241 = vpack.c.bf16 %v216, %v215
      %v242 = vpack.c.bf16 %v218, %v217
      %v243 = vpack.c.bf16 %v220, %v219
      %v244 = vpack.c.bf16 %v222, %v221
      %v245 = vpack.c.bf16 %v224, %v223
      %v246 = vpack.c.bf16 %v226, %v225
      %v247 = vpack.c.bf16 %v228, %v227
      %v248 = vpack.c.bf16 %v230, %v229
      %v249 = vpack.c.bf16 %v232, %v231
      %v250 = vpack.c.bf16 %v234, %v233
      %v251 = vld [vmem:[%s1] sm:$0xf]
      %v252 = vld [vmem:[%s1 + $0x4] sm:$0xf]
      %v253 = vld [vmem:[%s1 + $0x8] sm:$0xf]
      %v254 = vld [vmem:[%s1 + $0xc] sm:$0xf]
      %v255 = vlaneseq
      %v256 = vshrl.u32 %v255, 7
      %v257 = vsub.s32 0, %v256
      %v258 = vrot.slane %v202, %v257
      %v263 = vunpack.c.l.b16 %v251
      %v264 = vunpack.c.l.b16 %v252
      %v265 = vunpack.c.l.b16 %v253
      %v266 = vunpack.c.l.b16 %v254
      %v267 = vpack.c.b16 %v264, %v263
      %v268 = vpack.c.b16 %v266, %v265
      %vm271 = vcmask 261120
      %v273 = vsel %vm271, %v235, 0
      %v276 = vsel %vm271, %v236, 0
      %v279 = vsel %vm271, %v237, 0
      %v282 = vsel %vm271, %v238, 0
      %v285 = vsel %vm271, %v239, 0
      %v288 = vsel %vm271, %v240, 0
      %v291 = vsel %vm271, %v241, 0
      %v294 = vsel %vm271, %v242, 0
      %v297 = vsel %vm271, %v243, 0
      %v300 = vsel %vm271, %v244, 0
      %v303 = vsel %vm271, %v245, 0
      %v306 = vsel %vm271, %v246, 0
      %v309 = vsel %vm271, %v247, 0
      %v312 = vsel %vm271, %v248, 0
      %v315 = vsel %vm271, %v249, 0
      %v318 = vsel %vm271, %v250, 0
      %320 = vmatprep.subr.bf16.mxu0 0
      %321 = vmatpush1.bf16.msra.mxu0 0
      %322 = vmatprep.subr.bf16.mxu0 0
      %323 = vmatpush1.bf16.msra.mxu0 0
      %324 = vmatprep.subr.bf16.mxu0 0
      %325 = vmatpush1.bf16.msra.mxu0 0
      %326 = vmatprep.subr.bf16.mxu0 0
      %327 = vmatpush1.bf16.msra.mxu0 0
      %328 = vmatprep.subr.bf16.mxu0 0
      %329 = vmatpush1.bf16.msra.mxu0 0
      %330 = vmatprep.subr.bf16.mxu0 0
      %331 = vmatpush1.bf16.msra.mxu0 0
      %332 = vmatprep.subr.bf16.mxu0 0
      %333 = vmatpush1.bf16.msra.mxu0 %v268
      %334 = vmatprep.subr.bf16.mxu0 0
      %335 = vmatpush1.bf16.msra.mxu0 %v267
      %336 = vmatprep.subr.bf16.mxu0 0
      %337 = vmatpush2.bf16.msra.mxu0 0
      %338 = vmatprep.subr.bf16.mxu0 0
      %339 = vmatpush2.bf16.msra.mxu0 0
      %340 = vmatprep.subr.bf16.mxu0 0
      %341 = vmatpush2.bf16.msra.mxu0 0
      %342 = vmatprep.subr.bf16.mxu0 0
      %343 = vmatpush2.bf16.msra.mxu0 0
      %344 = vmatprep.subr.bf16.mxu0 0
      %345 = vmatpush2.bf16.msra.mxu0 0
      %346 = vmatprep.subr.bf16.mxu0 0
      %347 = vmatpush2.bf16.msra.mxu0 0
      %348 = vmatprep.subr.bf16.mxu0 0
      %349 = vmatpush2.bf16.msra.mxu0 0
      %350 = vmatprep.subr.bf16.mxu0 0
      %351 = vmatpush2.bf16.msra.mxu0 0
      %352 = vmatprep.mubr.bf16.mxu0 0
      %353 = vmatmul.mubr.bf16.gmra.mxu0 %v273
      %v354 = vpop.f32.mrf.mxu0
      %v355 = vadd.f32 %v258, %v354
      %v356 = vpop.f32.mrf.mxu0
      %v357 = vpop.f32.mrf.mxu0
      %v358 = vadd.f32 %v258, %v357
      %v359 = vpop.f32.mrf.mxu0
      %360 = vmatprep.mubr.bf16.mxu0 0
      %361 = vmatmul.mubr.bf16.gmra.mxu0 %v276
      %v362 = vpop.f32.mrf.mxu0
      %v363 = vadd.f32 %v258, %v362
      %v364 = vpop.f32.mrf.mxu0
      %v365 = vpop.f32.mrf.mxu0
      %v366 = vadd.f32 %v258, %v365
      %v367 = vpop.f32.mrf.mxu0
      %368 = vmatprep.mubr.bf16.mxu0 0
      %369 = vmatmul.mubr.bf16.gmra.mxu0 %v279
      %v370 = vpop.f32.mrf.mxu0
      %v371 = vadd.f32 %v258, %v370
      %v372 = vpop.f32.mrf.mxu0
      %v373 = vpop.f32.mrf.mxu0
      %v374 = vadd.f32 %v258, %v373
      %v375 = vpop.f32.mrf.mxu0
      %376 = vmatprep.mubr.bf16.mxu0 0
      %377 = vmatmul.mubr.bf16.gmra.mxu0 %v282
      %v378 = vpop.f32.mrf.mxu0
      %v379 = vadd.f32 %v258, %v378
      %v380 = vpop.f32.mrf.mxu0
      %v381 = vpop.f32.mrf.mxu0
      %v382 = vadd.f32 %v258, %v381
      %v383 = vpop.f32.mrf.mxu0
      %384 = vmatprep.mubr.bf16.mxu0 0
      %385 = vmatmul.mubr.bf16.gmra.mxu0 %v285
      %v386 = vpop.f32.mrf.mxu0
      %v387 = vadd.f32 %v258, %v386
      %v388 = vpop.f32.mrf.mxu0
      %v389 = vpop.f32.mrf.mxu0
      %v390 = vadd.f32 %v258, %v389
      %v391 = vpop.f32.mrf.mxu0
      %392 = vmatprep.mubr.bf16.mxu0 0
      %393 = vmatmul.mubr.bf16.gmra.mxu0 %v288
      %v394 = vpop.f32.mrf.mxu0
      %v395 = vadd.f32 %v258, %v394
      %v396 = vpop.f32.mrf.mxu0
      %v397 = vpop.f32.mrf.mxu0
      %v398 = vadd.f32 %v258, %v397
      %v399 = vpop.f32.mrf.mxu0
      %400 = vmatprep.mubr.bf16.mxu0 0
      %401 = vmatmul.mubr.bf16.gmra.mxu0 %v291
      %v402 = vpop.f32.mrf.mxu0
      %v403 = vadd.f32 %v258, %v402
      %v404 = vpop.f32.mrf.mxu0
      %v405 = vpop.f32.mrf.mxu0
      %v406 = vadd.f32 %v258, %v405
      %v407 = vpop.f32.mrf.mxu0
      %408 = vmatprep.mubr.bf16.mxu0 0
      %409 = vmatmul.mubr.bf16.gmra.mxu0 %v294
      %v410 = vpop.f32.mrf.mxu0
      %v411 = vadd.f32 %v258, %v410
      %v412 = vpop.f32.mrf.mxu0
      %v413 = vpop.f32.mrf.mxu0
      %v414 = vadd.f32 %v258, %v413
      %v415 = vpop.f32.mrf.mxu0
      %416 = vmatprep.mubr.bf16.mxu0 0
      %417 = vmatmul.mubr.bf16.gmra.mxu0 %v297
      %v418 = vpop.f32.mrf.mxu0
      %v419 = vadd.f32 %v258, %v418
      %v420 = vpop.f32.mrf.mxu0
      %v421 = vpop.f32.mrf.mxu0
      %v422 = vadd.f32 %v258, %v421
      %v423 = vpop.f32.mrf.mxu0
      %424 = vmatprep.mubr.bf16.mxu0 0
      %425 = vmatmul.mubr.bf16.gmra.mxu0 %v300
      %v426 = vpop.f32.mrf.mxu0
      %v427 = vadd.f32 %v258, %v426
      %v428 = vpop.f32.mrf.mxu0
      %v429 = vpop.f32.mrf.mxu0
      %v430 = vadd.f32 %v258, %v429
      %v431 = vpop.f32.mrf.mxu0
      %432 = vmatprep.mubr.bf16.mxu0 0
      %433 = vmatmul.mubr.bf16.gmra.mxu0 %v303
      %v434 = vpop.f32.mrf.mxu0
      %v435 = vadd.f32 %v258, %v434
      %v436 = vpop.f32.mrf.mxu0
      %v437 = vpop.f32.mrf.mxu0
      %v438 = vadd.f32 %v258, %v437
      %v439 = vpop.f32.mrf.mxu0
      %440 = vmatprep.mubr.bf16.mxu0 0
      %441 = vmatmul.mubr.bf16.gmra.mxu0 %v306
      %v442 = vpop.f32.mrf.mxu0
      %v443 = vadd.f32 %v258, %v442
      %v444 = vpop.f32.mrf.mxu0
      %v445 = vpop.f32.mrf.mxu0
      %v446 = vadd.f32 %v258, %v445
      %v447 = vpop.f32.mrf.mxu0
      %448 = vmatprep.mubr.bf16.mxu0 0
      %449 = vmatmul.mubr.bf16.gmra.mxu0 %v309
      %v450 = vpop.f32.mrf.mxu0
      %v451 = vadd.f32 %v258, %v450
      %v452 = vpop.f32.mrf.mxu0
      %v453 = vpop.f32.mrf.mxu0
      %v454 = vadd.f32 %v258, %v453
      %v455 = vpop.f32.mrf.mxu0
      %456 = vmatprep.mubr.bf16.mxu0 0
      %457 = vmatmul.mubr.bf16.gmra.mxu0 %v312
      %v458 = vpop.f32.mrf.mxu0
      %v459 = vadd.f32 %v258, %v458
      %v460 = vpop.f32.mrf.mxu0
      %v461 = vpop.f32.mrf.mxu0
      %v462 = vadd.f32 %v258, %v461
      %v463 = vpop.f32.mrf.mxu0
      %464 = vmatprep.mubr.bf16.mxu0 0
      %465 = vmatmul.mubr.bf16.gmra.mxu0 %v315
      %v466 = vpop.f32.mrf.mxu0
      %v467 = vadd.f32 %v258, %v466
      %v468 = vpop.f32.mrf.mxu0
      %v469 = vpop.f32.mrf.mxu0
      %v470 = vadd.f32 %v258, %v469
      %v471 = vpop.f32.mrf.mxu0
      %472 = vmatprep.mubr.bf16.mxu0 0
      %473 = vmatmul.mubr.bf16.gmra.mxu0 %v318
      %v474 = vpop.f32.mrf.mxu0
      %v475 = vadd.f32 %v258, %v474
      %v476 = vpop.f32.mrf.mxu0
      %v477 = vpop.f32.mrf.mxu0
      %v478 = vadd.f32 %v258, %v477
      %v479 = vpop.f32.mrf.mxu0
      %480 = vdwg.mxu0
      %v481 = vmax.f32 %v355, 0.0
      %v482 = vmax.f32 %v358, 0.0
      %v483 = vmax.f32 %v363, 0.0
      %v484 = vmax.f32 %v366, 0.0
      %v485 = vmax.f32 %v371, 0.0
      %v486 = vmax.f32 %v374, 0.0
      %v487 = vmax.f32 %v379, 0.0
      %v488 = vmax.f32 %v382, 0.0
      %v489 = vmax.f32 %v387, 0.0
      %v490 = vmax.f32 %v390, 0.0
      %v491 = vmax.f32 %v395, 0.0
      %v492 = vmax.f32 %v398, 0.0
      %v493 = vmax.f32 %v403, 0.0
      %v494 = vmax.f32 %v406, 0.0
      %v495 = vmax.f32 %v411, 0.0
      %v496 = vmax.f32 %v414, 0.0
      %v497 = vmax.f32 %v419, 0.0
      %v498 = vmax.f32 %v422, 0.0
      %v499 = vmax.f32 %v427, 0.0
      %v500 = vmax.f32 %v430, 0.0
      %v501 = vmax.f32 %v435, 0.0
      %v502 = vmax.f32 %v438, 0.0
      %v503 = vmax.f32 %v443, 0.0
      %v504 = vmax.f32 %v446, 0.0
      %v505 = vmax.f32 %v451, 0.0
      %v506 = vmax.f32 %v454, 0.0
      %v507 = vmax.f32 %v459, 0.0
      %v508 = vmax.f32 %v462, 0.0
      %v509 = vmax.f32 %v467, 0.0
      %v510 = vmax.f32 %v470, 0.0
      %v511 = vmax.f32 %v475, 0.0
      %v512 = vmax.f32 %v478, 0.0
      %v513 = vpack.c.bf16 %v482, %v481
      %v514 = vpack.c.bf16 %v484, %v483
      %v515 = vpack.c.bf16 %v486, %v485
      %v516 = vpack.c.bf16 %v488, %v487
      %v517 = vpack.c.bf16 %v490, %v489
      %v518 = vpack.c.bf16 %v492, %v491
      %v519 = vpack.c.bf16 %v494, %v493
      %v520 = vpack.c.bf16 %v496, %v495
      %v521 = vpack.c.bf16 %v498, %v497
      %v522 = vpack.c.bf16 %v500, %v499
      %v523 = vpack.c.bf16 %v502, %v501
      %v524 = vpack.c.bf16 %v504, %v503
      %v525 = vpack.c.bf16 %v506, %v505
      %v526 = vpack.c.bf16 %v508, %v507
      %v527 = vpack.c.bf16 %v510, %v509
      %v528 = vpack.c.bf16 %v512, %v511
      %v529 = vld [vmem:[%s2] sm:$0xf]
      %v530 = vld [vmem:[%s2 + $0xc] sm:$0xf]
      %v531 = vld [vmem:[%s2 + $0x18] sm:$0xf]
      %v532 = vld [vmem:[%s2 + $0x24] sm:$0xf]
      %v533 = vld [vmem:[%s2 + $0x30] sm:$0xf]
      %v534 = vld [vmem:[%s2 + $0x3c] sm:$0xf]
      %v535 = vld [vmem:[%s2 + $0x48] sm:$0xf]
      %v536 = vld [vmem:[%s2 + $0x54] sm:$0xf]
      %v537 = vld [vmem:[%s2 + $0x60] sm:$0xf]
      %v538 = vld [vmem:[%s2 + $0x6c] sm:$0xf]
      %v539 = vld [vmem:[%s2 + $0x78] sm:$0xf]
      %v540 = vld [vmem:[%s2 + $0x84] sm:$0xf]
      %v541 = vld [vmem:[%s2 + $0x90] sm:$0xf]
      %v542 = vld [vmem:[%s2 + $0x9c] sm:$0xf]
      %v543 = vld [vmem:[%s2 + $0xa8] sm:$0xf]
      %v544 = vld [vmem:[%s2 + $0xb4] sm:$0xf]
      %v545 = vlaneseq
      %v546 = vshrl.u32 %v545, 7
      %v547 = vsub.s32 1, %v546
      %v548 = vrot.slane %v202, %v547
      %v565 = vunpack.c.l.b16 %v529
      %v566 = vunpack.c.l.b16 %v530
      %v567 = vunpack.c.l.b16 %v531
      %v568 = vunpack.c.l.b16 %v532
      %v569 = vunpack.c.l.b16 %v533
      %v570 = vunpack.c.l.b16 %v534
      %v571 = vunpack.c.l.b16 %v535
      %v572 = vunpack.c.l.b16 %v536
      %v573 = vunpack.c.l.b16 %v537
      %v574 = vunpack.c.l.b16 %v538
      %v575 = vunpack.c.l.b16 %v539
      %v576 = vunpack.c.l.b16 %v540
      %v577 = vunpack.c.l.b16 %v541
      %v578 = vunpack.c.l.b16 %v542
      %v579 = vunpack.c.l.b16 %v543
      %v580 = vunpack.c.l.b16 %v544
      %v581 = vpack.c.b16 %v566, %v565
      %v582 = vpack.c.b16 %v568, %v567
      %v583 = vpack.c.b16 %v570, %v569
      %v584 = vpack.c.b16 %v572, %v571
      %v585 = vpack.c.b16 %v574, %v573
      %v586 = vpack.c.b16 %v576, %v575
      %v587 = vpack.c.b16 %v578, %v577
      %v588 = vpack.c.b16 %v580, %v579
      %597 = vmatprep.subr.bf16.mxu0 0
      %598 = vmatpush1.bf16.msra.mxu0 %v588
      %599 = vmatprep.subr.bf16.mxu0 0
      %600 = vmatpush1.bf16.msra.mxu0 %v587
      %601 = vmatprep.subr.bf16.mxu0 0
      %602 = vmatpush1.bf16.msra.mxu0 %v586
      %603 = vmatprep.subr.bf16.mxu0 0
      %604 = vmatpush1.bf16.msra.mxu0 %v585
      %605 = vmatprep.subr.bf16.mxu0 0
      %606 = vmatpush1.bf16.msra.mxu0 %v584
      %607 = vmatprep.subr.bf16.mxu0 0
      %608 = vmatpush1.bf16.msra.mxu0 %v583
      %609 = vmatprep.subr.bf16.mxu0 0
      %610 = vmatpush1.bf16.msra.mxu0 %v582
      %611 = vmatprep.subr.bf16.mxu0 0
      %612 = vmatpush1.bf16.msra.mxu0 %v581
      %613 = vmatprep.subr.bf16.mxu0 0
      %614 = vmatpush2.bf16.msra.mxu0 0
      %615 = vmatprep.subr.bf16.mxu0 0
      %616 = vmatpush2.bf16.msra.mxu0 0
      %617 = vmatprep.subr.bf16.mxu0 0
      %618 = vmatpush2.bf16.msra.mxu0 0
      %619 = vmatprep.subr.bf16.mxu0 0
      %620 = vmatpush2.bf16.msra.mxu0 0
      %621 = vmatprep.subr.bf16.mxu0 0
      %622 = vmatpush2.bf16.msra.mxu0 0
      %623 = vmatprep.subr.bf16.mxu0 0
      %624 = vmatpush2.bf16.msra.mxu0 0
      %625 = vmatprep.subr.bf16.mxu0 0
      %626 = vmatpush2.bf16.msra.mxu0 0
      %627 = vmatprep.subr.bf16.mxu0 0
      %628 = vmatpush2.bf16.msra.mxu0 0
      %629 = vmatprep.mubr.bf16.mxu0 0
      %630 = vmatmul.mubr.bf16.gmra.mxu0 %v513
      %v631 = vpop.f32.mrf.mxu0
      %v632 = vadd.f32 %v548, %v631
      %v633 = vpop.f32.mrf.mxu0
      %v634 = vpop.f32.mrf.mxu0
      %v635 = vadd.f32 %v548, %v634
      %v636 = vpop.f32.mrf.mxu0
      %637 = vmatprep.mubr.bf16.mxu0 0
      %638 = vmatmul.mubr.bf16.gmra.mxu0 %v514
      %v639 = vpop.f32.mrf.mxu0
      %v640 = vadd.f32 %v548, %v639
      %v641 = vpop.f32.mrf.mxu0
      %v642 = vpop.f32.mrf.mxu0
      %v643 = vadd.f32 %v548, %v642
      %v644 = vpop.f32.mrf.mxu0
      %645 = vmatprep.mubr.bf16.mxu0 0
      %646 = vmatmul.mubr.bf16.gmra.mxu0 %v515
      %v647 = vpop.f32.mrf.mxu0
      %v648 = vadd.f32 %v548, %v647
      %v649 = vpop.f32.mrf.mxu0
      %v650 = vpop.f32.mrf.mxu0
      %v651 = vadd.f32 %v548, %v650
      %v652 = vpop.f32.mrf.mxu0
      %653 = vmatprep.mubr.bf16.mxu0 0
      %654 = vmatmul.mubr.bf16.gmra.mxu0 %v516
      %v655 = vpop.f32.mrf.mxu0
      %v656 = vadd.f32 %v548, %v655
      %v657 = vpop.f32.mrf.mxu0
      %v658 = vpop.f32.mrf.mxu0
      %v659 = vadd.f32 %v548, %v658
      %v660 = vpop.f32.mrf.mxu0
      %661 = vmatprep.mubr.bf16.mxu0 0
      %662 = vmatmul.mubr.bf16.gmra.mxu0 %v517
      %v663 = vpop.f32.mrf.mxu0
      %v664 = vadd.f32 %v548, %v663
      %v665 = vpop.f32.mrf.mxu0
      %v666 = vpop.f32.mrf.mxu0
      %v667 = vadd.f32 %v548, %v666
      %v668 = vpop.f32.mrf.mxu0
      %669 = vmatprep.mubr.bf16.mxu0 0
      %670 = vmatmul.mubr.bf16.gmra.mxu0 %v518
      %v671 = vpop.f32.mrf.mxu0
      %v672 = vadd.f32 %v548, %v671
      %v673 = vpop.f32.mrf.mxu0
      %v674 = vpop.f32.mrf.mxu0
      %v675 = vadd.f32 %v548, %v674
      %v676 = vpop.f32.mrf.mxu0
      %677 = vmatprep.mubr.bf16.mxu0 0
      %678 = vmatmul.mubr.bf16.gmra.mxu0 %v519
      %v679 = vpop.f32.mrf.mxu0
      %v680 = vadd.f32 %v548, %v679
      %v681 = vpop.f32.mrf.mxu0
      %v682 = vpop.f32.mrf.mxu0
      %v683 = vadd.f32 %v548, %v682
      %v684 = vpop.f32.mrf.mxu0
      %685 = vmatprep.mubr.bf16.mxu0 0
      %686 = vmatmul.mubr.bf16.gmra.mxu0 %v520
      %v687 = vpop.f32.mrf.mxu0
      %v688 = vadd.f32 %v548, %v687
      %v689 = vpop.f32.mrf.mxu0
      %v690 = vpop.f32.mrf.mxu0
      %v691 = vadd.f32 %v548, %v690
      %v692 = vpop.f32.mrf.mxu0
      %693 = vmatprep.mubr.bf16.mxu0 0
      %694 = vmatmul.mubr.bf16.gmra.mxu0 %v521
      %v695 = vpop.f32.mrf.mxu0
      %v696 = vadd.f32 %v548, %v695
      %v697 = vpop.f32.mrf.mxu0
      %v698 = vpop.f32.mrf.mxu0
      %v699 = vadd.f32 %v548, %v698
      %v700 = vpop.f32.mrf.mxu0
      %701 = vmatprep.mubr.bf16.mxu0 0
      %702 = vmatmul.mubr.bf16.gmra.mxu0 %v522
      %v703 = vpop.f32.mrf.mxu0
      %v704 = vadd.f32 %v548, %v703
      %v705 = vpop.f32.mrf.mxu0
      %v706 = vpop.f32.mrf.mxu0
      %v707 = vadd.f32 %v548, %v706
      %v708 = vpop.f32.mrf.mxu0
      %709 = vmatprep.mubr.bf16.mxu0 0
      %710 = vmatmul.mubr.bf16.gmra.mxu0 %v523
      %v711 = vpop.f32.mrf.mxu0
      %v712 = vadd.f32 %v548, %v711
      %v713 = vpop.f32.mrf.mxu0
      %v714 = vpop.f32.mrf.mxu0
      %v715 = vadd.f32 %v548, %v714
      %v716 = vpop.f32.mrf.mxu0
      %717 = vmatprep.mubr.bf16.mxu0 0
      %718 = vmatmul.mubr.bf16.gmra.mxu0 %v524
      %v719 = vpop.f32.mrf.mxu0
      %v720 = vadd.f32 %v548, %v719
      %v721 = vpop.f32.mrf.mxu0
      %v722 = vpop.f32.mrf.mxu0
      %v723 = vadd.f32 %v548, %v722
      %v724 = vpop.f32.mrf.mxu0
      %725 = vmatprep.mubr.bf16.mxu0 0
      %726 = vmatmul.mubr.bf16.gmra.mxu0 %v525
      %v727 = vpop.f32.mrf.mxu0
      %v728 = vadd.f32 %v548, %v727
      %v729 = vpop.f32.mrf.mxu0
      %v730 = vpop.f32.mrf.mxu0
      %v731 = vadd.f32 %v548, %v730
      %v732 = vpop.f32.mrf.mxu0
      %733 = vmatprep.mubr.bf16.mxu0 0
      %734 = vmatmul.mubr.bf16.gmra.mxu0 %v526
      %v735 = vpop.f32.mrf.mxu0
      %v736 = vadd.f32 %v548, %v735
      %v737 = vpop.f32.mrf.mxu0
      %v738 = vpop.f32.mrf.mxu0
      %v739 = vadd.f32 %v548, %v738
      %v740 = vpop.f32.mrf.mxu0
      %741 = vmatprep.mubr.bf16.mxu0 0
      %742 = vmatmul.mubr.bf16.gmra.mxu0 %v527
      %v743 = vpop.f32.mrf.mxu0
      %v744 = vadd.f32 %v548, %v743
      %v745 = vpop.f32.mrf.mxu0
      %v746 = vpop.f32.mrf.mxu0
      %v747 = vadd.f32 %v548, %v746
      %v748 = vpop.f32.mrf.mxu0
      %749 = vmatprep.mubr.bf16.mxu0 0
      %750 = vmatmul.mubr.bf16.gmra.mxu0 %v528
      %v751 = vpop.f32.mrf.mxu0
      %v752 = vadd.f32 %v548, %v751
      %v753 = vpop.f32.mrf.mxu0
      %v754 = vpop.f32.mrf.mxu0
      %v755 = vadd.f32 %v548, %v754
      %v756 = vpop.f32.mrf.mxu0
      %757 = vdwg.mxu0
      %v758 = vmax.f32 %v632, 0.0
      %v759 = vmax.f32 %v635, 0.0
      %v760 = vmax.f32 %v640, 0.0
      %v761 = vmax.f32 %v643, 0.0
      %v762 = vmax.f32 %v648, 0.0
      %v763 = vmax.f32 %v651, 0.0
      %v764 = vmax.f32 %v656, 0.0
      %v765 = vmax.f32 %v659, 0.0
      %v766 = vmax.f32 %v664, 0.0
      %v767 = vmax.f32 %v667, 0.0
      %v768 = vmax.f32 %v672, 0.0
      %v769 = vmax.f32 %v675, 0.0
      %v770 = vmax.f32 %v680, 0.0
      %v771 = vmax.f32 %v683, 0.0
      %v772 = vmax.f32 %v688, 0.0
      %v773 = vmax.f32 %v691, 0.0
      %v774 = vmax.f32 %v696, 0.0
      %v775 = vmax.f32 %v699, 0.0
      %v776 = vmax.f32 %v704, 0.0
      %v777 = vmax.f32 %v707, 0.0
      %v778 = vmax.f32 %v712, 0.0
      %v779 = vmax.f32 %v715, 0.0
      %v780 = vmax.f32 %v720, 0.0
      %v781 = vmax.f32 %v723, 0.0
      %v782 = vmax.f32 %v728, 0.0
      %v783 = vmax.f32 %v731, 0.0
      %v784 = vmax.f32 %v736, 0.0
      %v785 = vmax.f32 %v739, 0.0
      %v786 = vmax.f32 %v744, 0.0
      %v787 = vmax.f32 %v747, 0.0
      %v788 = vmax.f32 %v752, 0.0
      %v789 = vmax.f32 %v755, 0.0
      %v790 = vpack.c.bf16 %v759, %v758
      %v791 = vpack.c.bf16 %v761, %v760
      %v792 = vpack.c.bf16 %v763, %v762
      %v793 = vpack.c.bf16 %v765, %v764
      %v794 = vpack.c.bf16 %v767, %v766
      %v795 = vpack.c.bf16 %v769, %v768
      %v796 = vpack.c.bf16 %v771, %v770
      %v797 = vpack.c.bf16 %v773, %v772
      %v798 = vpack.c.bf16 %v775, %v774
      %v799 = vpack.c.bf16 %v777, %v776
      %v800 = vpack.c.bf16 %v779, %v778
      %v801 = vpack.c.bf16 %v781, %v780
      %v802 = vpack.c.bf16 %v783, %v782
      %v803 = vpack.c.bf16 %v785, %v784
      %v804 = vpack.c.bf16 %v787, %v786
      %v805 = vpack.c.bf16 %v789, %v788
      %v806 = vld [vmem:[%s2 + $0x4] sm:$0xf]
      %v807 = vld [vmem:[%s2 + $0x10] sm:$0xf]
      %v808 = vld [vmem:[%s2 + $0x1c] sm:$0xf]
      %v809 = vld [vmem:[%s2 + $0x28] sm:$0xf]
      %v810 = vld [vmem:[%s2 + $0x34] sm:$0xf]
      %v811 = vld [vmem:[%s2 + $0x40] sm:$0xf]
      %v812 = vld [vmem:[%s2 + $0x4c] sm:$0xf]
      %v813 = vld [vmem:[%s2 + $0x58] sm:$0xf]
      %v814 = vld [vmem:[%s2 + $0x64] sm:$0xf]
      %v815 = vld [vmem:[%s2 + $0x70] sm:$0xf]
      %v816 = vld [vmem:[%s2 + $0x7c] sm:$0xf]
      %v817 = vld [vmem:[%s2 + $0x88] sm:$0xf]
      %v818 = vld [vmem:[%s2 + $0x94] sm:$0xf]
      %v819 = vld [vmem:[%s2 + $0xa0] sm:$0xf]
      %v820 = vld [vmem:[%s2 + $0xac] sm:$0xf]
      %v821 = vld [vmem:[%s2 + $0xb8] sm:$0xf]
      %v822 = vlaneseq
      %v823 = vshrl.u32 %v822, 7
      %v824 = vsub.s32 2, %v823
      %v825 = vrot.slane %v202, %v824
      %v842 = vunpack.c.l.b16 %v806
      %v843 = vunpack.c.l.b16 %v807
      %v844 = vunpack.c.l.b16 %v808
      %v845 = vunpack.c.l.b16 %v809
      %v846 = vunpack.c.l.b16 %v810
      %v847 = vunpack.c.l.b16 %v811
      %v848 = vunpack.c.l.b16 %v812
      %v849 = vunpack.c.l.b16 %v813
      %v850 = vunpack.c.l.b16 %v814
      %v851 = vunpack.c.l.b16 %v815
      %v852 = vunpack.c.l.b16 %v816
      %v853 = vunpack.c.l.b16 %v817
      %v854 = vunpack.c.l.b16 %v818
      %v855 = vunpack.c.l.b16 %v819
      %v856 = vunpack.c.l.b16 %v820
      %v857 = vunpack.c.l.b16 %v821
      %v858 = vpack.c.b16 %v843, %v842
      %v859 = vpack.c.b16 %v845, %v844
      %v860 = vpack.c.b16 %v847, %v846
      %v861 = vpack.c.b16 %v849, %v848
      %v862 = vpack.c.b16 %v851, %v850
      %v863 = vpack.c.b16 %v853, %v852
      %v864 = vpack.c.b16 %v855, %v854
      %v865 = vpack.c.b16 %v857, %v856
      %874 = vmatprep.subr.bf16.mxu0 0
      %875 = vmatpush1.bf16.msra.mxu0 %v865
      %876 = vmatprep.subr.bf16.mxu0 0
      %877 = vmatpush1.bf16.msra.mxu0 %v864
      %878 = vmatprep.subr.bf16.mxu0 0
      %879 = vmatpush1.bf16.msra.mxu0 %v863
      %880 = vmatprep.subr.bf16.mxu0 0
      %881 = vmatpush1.bf16.msra.mxu0 %v862
      %882 = vmatprep.subr.bf16.mxu0 0
      %883 = vmatpush1.bf16.msra.mxu0 %v861
      %884 = vmatprep.subr.bf16.mxu0 0
      %885 = vmatpush1.bf16.msra.mxu0 %v860
      %886 = vmatprep.subr.bf16.mxu0 0
      %887 = vmatpush1.bf16.msra.mxu0 %v859
      %888 = vmatprep.subr.bf16.mxu0 0
      %889 = vmatpush1.bf16.msra.mxu0 %v858
      %890 = vmatprep.subr.bf16.mxu0 0
      %891 = vmatpush2.bf16.msra.mxu0 0
      %892 = vmatprep.subr.bf16.mxu0 0
      %893 = vmatpush2.bf16.msra.mxu0 0
      %894 = vmatprep.subr.bf16.mxu0 0
      %895 = vmatpush2.bf16.msra.mxu0 0
      %896 = vmatprep.subr.bf16.mxu0 0
      %897 = vmatpush2.bf16.msra.mxu0 0
      %898 = vmatprep.subr.bf16.mxu0 0
      %899 = vmatpush2.bf16.msra.mxu0 0
      %900 = vmatprep.subr.bf16.mxu0 0
      %901 = vmatpush2.bf16.msra.mxu0 0
      %902 = vmatprep.subr.bf16.mxu0 0
      %903 = vmatpush2.bf16.msra.mxu0 0
      %904 = vmatprep.subr.bf16.mxu0 0
      %905 = vmatpush2.bf16.msra.mxu0 0
      %906 = vmatprep.mubr.bf16.mxu0 0
      %907 = vmatmul.mubr.bf16.gmra.mxu0 %v790
      %v908 = vpop.f32.mrf.mxu0
      %v909 = vadd.f32 %v825, %v908
      %v910 = vpop.f32.mrf.mxu0
      %v911 = vpop.f32.mrf.mxu0
      %v912 = vadd.f32 %v825, %v911
      %v913 = vpop.f32.mrf.mxu0
      %914 = vmatprep.mubr.bf16.mxu0 0
      %915 = vmatmul.mubr.bf16.gmra.mxu0 %v791
      %v916 = vpop.f32.mrf.mxu0
      %v917 = vadd.f32 %v825, %v916
      %v918 = vpop.f32.mrf.mxu0
      %v919 = vpop.f32.mrf.mxu0
      %v920 = vadd.f32 %v825, %v919
      %v921 = vpop.f32.mrf.mxu0
      %922 = vmatprep.mubr.bf16.mxu0 0
      %923 = vmatmul.mubr.bf16.gmra.mxu0 %v792
      %v924 = vpop.f32.mrf.mxu0
      %v925 = vadd.f32 %v825, %v924
      %v926 = vpop.f32.mrf.mxu0
      %v927 = vpop.f32.mrf.mxu0
      %v928 = vadd.f32 %v825, %v927
      %v929 = vpop.f32.mrf.mxu0
      %930 = vmatprep.mubr.bf16.mxu0 0
      %931 = vmatmul.mubr.bf16.gmra.mxu0 %v793
      %v932 = vpop.f32.mrf.mxu0
      %v933 = vadd.f32 %v825, %v932
      %v934 = vpop.f32.mrf.mxu0
      %v935 = vpop.f32.mrf.mxu0
      %v936 = vadd.f32 %v825, %v935
      %v937 = vpop.f32.mrf.mxu0
      %938 = vmatprep.mubr.bf16.mxu0 0
      %939 = vmatmul.mubr.bf16.gmra.mxu0 %v794
      %v940 = vpop.f32.mrf.mxu0
      %v941 = vadd.f32 %v825, %v940
      %v942 = vpop.f32.mrf.mxu0
      %v943 = vpop.f32.mrf.mxu0
      %v944 = vadd.f32 %v825, %v943
      %v945 = vpop.f32.mrf.mxu0
      %946 = vmatprep.mubr.bf16.mxu0 0
      %947 = vmatmul.mubr.bf16.gmra.mxu0 %v795
      %v948 = vpop.f32.mrf.mxu0
      %v949 = vadd.f32 %v825, %v948
      %v950 = vpop.f32.mrf.mxu0
      %v951 = vpop.f32.mrf.mxu0
      %v952 = vadd.f32 %v825, %v951
      %v953 = vpop.f32.mrf.mxu0
      %954 = vmatprep.mubr.bf16.mxu0 0
      %955 = vmatmul.mubr.bf16.gmra.mxu0 %v796
      %v956 = vpop.f32.mrf.mxu0
      %v957 = vadd.f32 %v825, %v956
      %v958 = vpop.f32.mrf.mxu0
      %v959 = vpop.f32.mrf.mxu0
      %v960 = vadd.f32 %v825, %v959
      %v961 = vpop.f32.mrf.mxu0
      %962 = vmatprep.mubr.bf16.mxu0 0
      %963 = vmatmul.mubr.bf16.gmra.mxu0 %v797
      %v964 = vpop.f32.mrf.mxu0
      %v965 = vadd.f32 %v825, %v964
      %v966 = vpop.f32.mrf.mxu0
      %v967 = vpop.f32.mrf.mxu0
      %v968 = vadd.f32 %v825, %v967
      %v969 = vpop.f32.mrf.mxu0
      %970 = vmatprep.mubr.bf16.mxu0 0
      %971 = vmatmul.mubr.bf16.gmra.mxu0 %v798
      %v972 = vpop.f32.mrf.mxu0
      %v973 = vadd.f32 %v825, %v972
      %v974 = vpop.f32.mrf.mxu0
      %v975 = vpop.f32.mrf.mxu0
      %v976 = vadd.f32 %v825, %v975
      %v977 = vpop.f32.mrf.mxu0
      %978 = vmatprep.mubr.bf16.mxu0 0
      %979 = vmatmul.mubr.bf16.gmra.mxu0 %v799
      %v980 = vpop.f32.mrf.mxu0
      %v981 = vadd.f32 %v825, %v980
      %v982 = vpop.f32.mrf.mxu0
      %v983 = vpop.f32.mrf.mxu0
      %v984 = vadd.f32 %v825, %v983
      %v985 = vpop.f32.mrf.mxu0
      %986 = vmatprep.mubr.bf16.mxu0 0
      %987 = vmatmul.mubr.bf16.gmra.mxu0 %v800
      %v988 = vpop.f32.mrf.mxu0
      %v989 = vadd.f32 %v825, %v988
      %v990 = vpop.f32.mrf.mxu0
      %v991 = vpop.f32.mrf.mxu0
      %v992 = vadd.f32 %v825, %v991
      %v993 = vpop.f32.mrf.mxu0
      %994 = vmatprep.mubr.bf16.mxu0 0
      %995 = vmatmul.mubr.bf16.gmra.mxu0 %v801
      %v996 = vpop.f32.mrf.mxu0
      %v997 = vadd.f32 %v825, %v996
      %v998 = vpop.f32.mrf.mxu0
      %v999 = vpop.f32.mrf.mxu0
      %v1000 = vadd.f32 %v825, %v999
      %v1001 = vpop.f32.mrf.mxu0
      %1002 = vmatprep.mubr.bf16.mxu0 0
      %1003 = vmatmul.mubr.bf16.gmra.mxu0 %v802
      %v1004 = vpop.f32.mrf.mxu0
      %v1005 = vadd.f32 %v825, %v1004
      %v1006 = vpop.f32.mrf.mxu0
      %v1007 = vpop.f32.mrf.mxu0
      %v1008 = vadd.f32 %v825, %v1007
      %v1009 = vpop.f32.mrf.mxu0
      %1010 = vmatprep.mubr.bf16.mxu0 0
      %1011 = vmatmul.mubr.bf16.gmra.mxu0 %v803
      %v1012 = vpop.f32.mrf.mxu0
      %v1013 = vadd.f32 %v825, %v1012
      %v1014 = vpop.f32.mrf.mxu0
      %v1015 = vpop.f32.mrf.mxu0
      %v1016 = vadd.f32 %v825, %v1015
      %v1017 = vpop.f32.mrf.mxu0
      %1018 = vmatprep.mubr.bf16.mxu0 0
      %1019 = vmatmul.mubr.bf16.gmra.mxu0 %v804
      %v1020 = vpop.f32.mrf.mxu0
      %v1021 = vadd.f32 %v825, %v1020
      %v1022 = vpop.f32.mrf.mxu0
      %v1023 = vpop.f32.mrf.mxu0
      %v1024 = vadd.f32 %v825, %v1023
      %v1025 = vpop.f32.mrf.mxu0
      %1026 = vmatprep.mubr.bf16.mxu0 0
      %1027 = vmatmul.mubr.bf16.gmra.mxu0 %v805
      %v1028 = vpop.f32.mrf.mxu0
      %v1029 = vadd.f32 %v825, %v1028
      %v1030 = vpop.f32.mrf.mxu0
      %v1031 = vpop.f32.mrf.mxu0
      %v1032 = vadd.f32 %v825, %v1031
      %v1033 = vpop.f32.mrf.mxu0
      %1034 = vdwg.mxu0
      %v1035 = vmax.f32 %v909, 0.0
      %v1036 = vmax.f32 %v912, 0.0
      %v1037 = vmax.f32 %v917, 0.0
      %v1038 = vmax.f32 %v920, 0.0
      %v1039 = vmax.f32 %v925, 0.0
      %v1040 = vmax.f32 %v928, 0.0
      %v1041 = vmax.f32 %v933, 0.0
      %v1042 = vmax.f32 %v936, 0.0
      %v1043 = vmax.f32 %v941, 0.0
      %v1044 = vmax.f32 %v944, 0.0
      %v1045 = vmax.f32 %v949, 0.0
      %v1046 = vmax.f32 %v952, 0.0
      %v1047 = vmax.f32 %v957, 0.0
      %v1048 = vmax.f32 %v960, 0.0
      %v1049 = vmax.f32 %v965, 0.0
      %v1050 = vmax.f32 %v968, 0.0
      %v1051 = vmax.f32 %v973, 0.0
      %v1052 = vmax.f32 %v976, 0.0
      %v1053 = vmax.f32 %v981, 0.0
      %v1054 = vmax.f32 %v984, 0.0
      %v1055 = vmax.f32 %v989, 0.0
      %v1056 = vmax.f32 %v992, 0.0
      %v1057 = vmax.f32 %v997, 0.0
      %v1058 = vmax.f32 %v1000, 0.0
      %v1059 = vmax.f32 %v1005, 0.0
      %v1060 = vmax.f32 %v1008, 0.0
      %v1061 = vmax.f32 %v1013, 0.0
      %v1062 = vmax.f32 %v1016, 0.0
      %v1063 = vmax.f32 %v1021, 0.0
      %v1064 = vmax.f32 %v1024, 0.0
      %v1065 = vmax.f32 %v1029, 0.0
      %v1066 = vmax.f32 %v1032, 0.0
      %v1067 = vpack.c.bf16 %v1036, %v1035
      %v1068 = vpack.c.bf16 %v1038, %v1037
      %v1069 = vpack.c.bf16 %v1040, %v1039
      %v1070 = vpack.c.bf16 %v1042, %v1041
      %v1071 = vpack.c.bf16 %v1044, %v1043
      %v1072 = vpack.c.bf16 %v1046, %v1045
      %v1073 = vpack.c.bf16 %v1048, %v1047
      %v1074 = vpack.c.bf16 %v1050, %v1049
      %v1075 = vpack.c.bf16 %v1052, %v1051
      %v1076 = vpack.c.bf16 %v1054, %v1053
      %v1077 = vpack.c.bf16 %v1056, %v1055
      %v1078 = vpack.c.bf16 %v1058, %v1057
      %v1079 = vpack.c.bf16 %v1060, %v1059
      %v1080 = vpack.c.bf16 %v1062, %v1061
      %v1081 = vpack.c.bf16 %v1064, %v1063
      %v1082 = vpack.c.bf16 %v1066, %v1065
      %v1083 = vld [vmem:[%s2 + $0x8] sm:$0xf]
      %v1084 = vld [vmem:[%s2 + $0x14] sm:$0xf]
      %v1085 = vld [vmem:[%s2 + $0x20] sm:$0xf]
      %v1086 = vld [vmem:[%s2 + $0x2c] sm:$0xf]
      %v1087 = vld [vmem:[%s2 + $0x38] sm:$0xf]
      %v1088 = vld [vmem:[%s2 + $0x44] sm:$0xf]
      %v1089 = vld [vmem:[%s2 + $0x50] sm:$0xf]
      %v1090 = vld [vmem:[%s2 + $0x5c] sm:$0xf]
      %v1091 = vld [vmem:[%s2 + $0x68] sm:$0xf]
      %v1092 = vld [vmem:[%s2 + $0x74] sm:$0xf]
      %v1093 = vld [vmem:[%s2 + $0x80] sm:$0xf]
      %v1094 = vld [vmem:[%s2 + $0x8c] sm:$0xf]
      %v1095 = vld [vmem:[%s2 + $0x98] sm:$0xf]
      %v1096 = vld [vmem:[%s2 + $0xa4] sm:$0xf]
      %v1097 = vld [vmem:[%s2 + $0xb0] sm:$0xf]
      %v1098 = vld [vmem:[%s2 + $0xbc] sm:$0xf]
      %v1099 = vlaneseq
      %v1100 = vshrl.u32 %v1099, 7
      %v1101 = vsub.s32 3, %v1100
      %v1102 = vrot.slane %v202, %v1101
      %v1119 = vunpack.c.l.b16 %v1083
      %v1120 = vunpack.c.l.b16 %v1084
      %v1121 = vunpack.c.l.b16 %v1085
      %v1122 = vunpack.c.l.b16 %v1086
      %v1123 = vunpack.c.l.b16 %v1087
      %v1124 = vunpack.c.l.b16 %v1088
      %v1125 = vunpack.c.l.b16 %v1089
      %v1126 = vunpack.c.l.b16 %v1090
      %v1127 = vunpack.c.l.b16 %v1091
      %v1128 = vunpack.c.l.b16 %v1092
      %v1129 = vunpack.c.l.b16 %v1093
      %v1130 = vunpack.c.l.b16 %v1094
      %v1131 = vunpack.c.l.b16 %v1095
      %v1132 = vunpack.c.l.b16 %v1096
      %v1133 = vunpack.c.l.b16 %v1097
      %v1134 = vunpack.c.l.b16 %v1098
      %v1135 = vpack.c.b16 %v1120, %v1119
      %v1136 = vpack.c.b16 %v1122, %v1121
      %v1137 = vpack.c.b16 %v1124, %v1123
      %v1138 = vpack.c.b16 %v1126, %v1125
      %v1139 = vpack.c.b16 %v1128, %v1127
      %v1140 = vpack.c.b16 %v1130, %v1129
      %v1141 = vpack.c.b16 %v1132, %v1131
      %v1142 = vpack.c.b16 %v1134, %v1133
      %1151 = vmatprep.subr.bf16.mxu0 0
      %1152 = vmatpush1.bf16.msra.mxu0 %v1142
      %1153 = vmatprep.subr.bf16.mxu0 0
      %1154 = vmatpush1.bf16.msra.mxu0 %v1141
      %1155 = vmatprep.subr.bf16.mxu0 0
      %1156 = vmatpush1.bf16.msra.mxu0 %v1140
      %1157 = vmatprep.subr.bf16.mxu0 0
      %1158 = vmatpush1.bf16.msra.mxu0 %v1139
      %1159 = vmatprep.subr.bf16.mxu0 0
      %1160 = vmatpush1.bf16.msra.mxu0 %v1138
      %1161 = vmatprep.subr.bf16.mxu0 0
      %1162 = vmatpush1.bf16.msra.mxu0 %v1137
      %1163 = vmatprep.subr.bf16.mxu0 0
      %1164 = vmatpush1.bf16.msra.mxu0 %v1136
      %1165 = vmatprep.subr.bf16.mxu0 0
      %1166 = vmatpush1.bf16.msra.mxu0 %v1135
      %1167 = vmatprep.subr.bf16.mxu0 0
      %1168 = vmatpush2.bf16.msra.mxu0 0
      %1169 = vmatprep.subr.bf16.mxu0 0
      %1170 = vmatpush2.bf16.msra.mxu0 0
      %1171 = vmatprep.subr.bf16.mxu0 0
      %1172 = vmatpush2.bf16.msra.mxu0 0
      %1173 = vmatprep.subr.bf16.mxu0 0
      %1174 = vmatpush2.bf16.msra.mxu0 0
      %1175 = vmatprep.subr.bf16.mxu0 0
      %1176 = vmatpush2.bf16.msra.mxu0 0
      %1177 = vmatprep.subr.bf16.mxu0 0
      %1178 = vmatpush2.bf16.msra.mxu0 0
      %1179 = vmatprep.subr.bf16.mxu0 0
      %1180 = vmatpush2.bf16.msra.mxu0 0
      %1181 = vmatprep.subr.bf16.mxu0 0
      %1182 = vmatpush2.bf16.msra.mxu0 0
      %1183 = vmatprep.mubr.bf16.mxu0 0
      %1184 = vmatmul.mubr.bf16.gmra.mxu0 %v1067
      %v1185 = vpop.f32.mrf.mxu0
      %v1186 = vadd.f32 %v1102, %v1185
      %v1187 = vpop.f32.mrf.mxu0
      %v1188 = vpop.f32.mrf.mxu0
      %v1189 = vadd.f32 %v1102, %v1188
      %v1190 = vpop.f32.mrf.mxu0
      %1191 = vmatprep.mubr.bf16.mxu0 0
      %1192 = vmatmul.mubr.bf16.gmra.mxu0 %v1068
      %v1193 = vpop.f32.mrf.mxu0
      %v1194 = vadd.f32 %v1102, %v1193
      %v1195 = vpop.f32.mrf.mxu0
      %v1196 = vpop.f32.mrf.mxu0
      %v1197 = vadd.f32 %v1102, %v1196
      %v1198 = vpop.f32.mrf.mxu0
      %1199 = vmatprep.mubr.bf16.mxu0 0
      %1200 = vmatmul.mubr.bf16.gmra.mxu0 %v1069
      %v1201 = vpop.f32.mrf.mxu0
      %v1202 = vadd.f32 %v1102, %v1201
      %v1203 = vpop.f32.mrf.mxu0
      %v1204 = vpop.f32.mrf.mxu0
      %v1205 = vadd.f32 %v1102, %v1204
      %v1206 = vpop.f32.mrf.mxu0
      %1207 = vmatprep.mubr.bf16.mxu0 0
      %1208 = vmatmul.mubr.bf16.gmra.mxu0 %v1070
      %v1209 = vpop.f32.mrf.mxu0
      %v1210 = vadd.f32 %v1102, %v1209
      %v1211 = vpop.f32.mrf.mxu0
      %v1212 = vpop.f32.mrf.mxu0
      %v1213 = vadd.f32 %v1102, %v1212
      %v1214 = vpop.f32.mrf.mxu0
      %1215 = vmatprep.mubr.bf16.mxu0 0
      %1216 = vmatmul.mubr.bf16.gmra.mxu0 %v1071
      %v1217 = vpop.f32.mrf.mxu0
      %v1218 = vadd.f32 %v1102, %v1217
      %v1219 = vpop.f32.mrf.mxu0
      %v1220 = vpop.f32.mrf.mxu0
      %v1221 = vadd.f32 %v1102, %v1220
      %v1222 = vpop.f32.mrf.mxu0
      %1223 = vmatprep.mubr.bf16.mxu0 0
      %1224 = vmatmul.mubr.bf16.gmra.mxu0 %v1072
      %v1225 = vpop.f32.mrf.mxu0
      %v1226 = vadd.f32 %v1102, %v1225
      %v1227 = vpop.f32.mrf.mxu0
      %v1228 = vpop.f32.mrf.mxu0
      %v1229 = vadd.f32 %v1102, %v1228
      %v1230 = vpop.f32.mrf.mxu0
      %1231 = vmatprep.mubr.bf16.mxu0 0
      %1232 = vmatmul.mubr.bf16.gmra.mxu0 %v1073
      %v1233 = vpop.f32.mrf.mxu0
      %v1234 = vadd.f32 %v1102, %v1233
      %v1235 = vpop.f32.mrf.mxu0
      %v1236 = vpop.f32.mrf.mxu0
      %v1237 = vadd.f32 %v1102, %v1236
      %v1238 = vpop.f32.mrf.mxu0
      %1239 = vmatprep.mubr.bf16.mxu0 0
      %1240 = vmatmul.mubr.bf16.gmra.mxu0 %v1074
      %v1241 = vpop.f32.mrf.mxu0
      %v1242 = vadd.f32 %v1102, %v1241
      %v1243 = vpop.f32.mrf.mxu0
      %v1244 = vpop.f32.mrf.mxu0
      %v1245 = vadd.f32 %v1102, %v1244
      %v1246 = vpop.f32.mrf.mxu0
      %1247 = vmatprep.mubr.bf16.mxu0 0
      %1248 = vmatmul.mubr.bf16.gmra.mxu0 %v1075
      %v1249 = vpop.f32.mrf.mxu0
      %v1250 = vadd.f32 %v1102, %v1249
      %v1251 = vpop.f32.mrf.mxu0
      %v1252 = vpop.f32.mrf.mxu0
      %v1253 = vadd.f32 %v1102, %v1252
      %v1254 = vpop.f32.mrf.mxu0
      %1255 = vmatprep.mubr.bf16.mxu0 0
      %1256 = vmatmul.mubr.bf16.gmra.mxu0 %v1076
      %v1257 = vpop.f32.mrf.mxu0
      %v1258 = vadd.f32 %v1102, %v1257
      %v1259 = vpop.f32.mrf.mxu0
      %v1260 = vpop.f32.mrf.mxu0
      %v1261 = vadd.f32 %v1102, %v1260
      %v1262 = vpop.f32.mrf.mxu0
      %1263 = vmatprep.mubr.bf16.mxu0 0
      %1264 = vmatmul.mubr.bf16.gmra.mxu0 %v1077
      %v1265 = vpop.f32.mrf.mxu0
      %v1266 = vadd.f32 %v1102, %v1265
      %v1267 = vpop.f32.mrf.mxu0
      %v1268 = vpop.f32.mrf.mxu0
      %v1269 = vadd.f32 %v1102, %v1268
      %v1270 = vpop.f32.mrf.mxu0
      %1271 = vmatprep.mubr.bf16.mxu0 0
      %1272 = vmatmul.mubr.bf16.gmra.mxu0 %v1078
      %v1273 = vpop.f32.mrf.mxu0
      %v1274 = vadd.f32 %v1102, %v1273
      %v1275 = vpop.f32.mrf.mxu0
      %v1276 = vpop.f32.mrf.mxu0
      %v1277 = vadd.f32 %v1102, %v1276
      %v1278 = vpop.f32.mrf.mxu0
      %1279 = vmatprep.mubr.bf16.mxu0 0
      %1280 = vmatmul.mubr.bf16.gmra.mxu0 %v1079
      %v1281 = vpop.f32.mrf.mxu0
      %v1282 = vadd.f32 %v1102, %v1281
      %v1283 = vpop.f32.mrf.mxu0
      %v1284 = vpop.f32.mrf.mxu0
      %v1285 = vadd.f32 %v1102, %v1284
      %v1286 = vpop.f32.mrf.mxu0
      %1287 = vmatprep.mubr.bf16.mxu0 0
      %1288 = vmatmul.mubr.bf16.gmra.mxu0 %v1080
      %v1289 = vpop.f32.mrf.mxu0
      %v1290 = vadd.f32 %v1102, %v1289
      %v1291 = vpop.f32.mrf.mxu0
      %v1292 = vpop.f32.mrf.mxu0
      %v1293 = vadd.f32 %v1102, %v1292
      %v1294 = vpop.f32.mrf.mxu0
      %1295 = vmatprep.mubr.bf16.mxu0 0
      %1296 = vmatmul.mubr.bf16.gmra.mxu0 %v1081
      %v1297 = vpop.f32.mrf.mxu0
      %v1298 = vadd.f32 %v1102, %v1297
      %v1299 = vpop.f32.mrf.mxu0
      %v1300 = vpop.f32.mrf.mxu0
      %v1301 = vadd.f32 %v1102, %v1300
      %v1302 = vpop.f32.mrf.mxu0
      %1303 = vmatprep.mubr.bf16.mxu0 0
      %1304 = vmatmul.mubr.bf16.gmra.mxu0 %v1082
      %v1305 = vpop.f32.mrf.mxu0
      %v1306 = vadd.f32 %v1102, %v1305
      %v1307 = vpop.f32.mrf.mxu0
      %v1308 = vpop.f32.mrf.mxu0
      %v1309 = vadd.f32 %v1102, %v1308
      %v1310 = vpop.f32.mrf.mxu0
      %1311 = vdwg.mxu0
      %vm1312 = vcmask 64512
      %1313 = vst.msk [vmem:[%s199] sm:$0xff] %vm1312, %v1186
      %1314 = vst.msk [vmem:[%s199 + $0x8] sm:$0xff] %vm1312, %v1189
      %1315 = vst.msk [vmem:[%s199 + $0x10] sm:$0xff] %vm1312, %v1194
      %1316 = vst.msk [vmem:[%s199 + $0x18] sm:$0xff] %vm1312, %v1197
      %1317 = vst.msk [vmem:[%s199 + $0x20] sm:$0xff] %vm1312, %v1202
      %1318 = vst.msk [vmem:[%s199 + $0x28] sm:$0xff] %vm1312, %v1205
      %1319 = vst.msk [vmem:[%s199 + $0x30] sm:$0xff] %vm1312, %v1210
      %1320 = vst.msk [vmem:[%s199 + $0x38] sm:$0xff] %vm1312, %v1213
      %1321 = vst.msk [vmem:[%s199 + $0x40] sm:$0xff] %vm1312, %v1218
      %1322 = vst.msk [vmem:[%s199 + $0x48] sm:$0xff] %vm1312, %v1221
      %1323 = vst.msk [vmem:[%s199 + $0x50] sm:$0xff] %vm1312, %v1226
      %1324 = vst.msk [vmem:[%s199 + $0x58] sm:$0xff] %vm1312, %v1229
      %1325 = vst.msk [vmem:[%s199 + $0x60] sm:$0xff] %vm1312, %v1234
      %1326 = vst.msk [vmem:[%s199 + $0x68] sm:$0xff] %vm1312, %v1237
      %1327 = vst.msk [vmem:[%s199 + $0x70] sm:$0xff] %vm1312, %v1242
      %1328 = vst.msk [vmem:[%s199 + $0x78] sm:$0xff] %vm1312, %v1245
      %1329 = vst.msk [vmem:[%s199 + $0x80] sm:$0xff] %vm1312, %v1250
      %1330 = vst.msk [vmem:[%s199 + $0x88] sm:$0xff] %vm1312, %v1253
      %1331 = vst.msk [vmem:[%s199 + $0x90] sm:$0xff] %vm1312, %v1258
      %1332 = vst.msk [vmem:[%s199 + $0x98] sm:$0xff] %vm1312, %v1261
      %1333 = vst.msk [vmem:[%s199 + $0xa0] sm:$0xff] %vm1312, %v1266
      %1334 = vst.msk [vmem:[%s199 + $0xa8] sm:$0xff] %vm1312, %v1269
      %1335 = vst.msk [vmem:[%s199 + $0xb0] sm:$0xff] %vm1312, %v1274
      %1336 = vst.msk [vmem:[%s199 + $0xb8] sm:$0xff] %vm1312, %v1277
      %1337 = vst.msk [vmem:[%s199 + $0xc0] sm:$0xff] %vm1312, %v1282
      %1338 = vst.msk [vmem:[%s199 + $0xc8] sm:$0xff] %vm1312, %v1285
      %1339 = vst.msk [vmem:[%s199 + $0xd0] sm:$0xff] %vm1312, %v1290
      %1340 = vst.msk [vmem:[%s199 + $0xd8] sm:$0xff] %vm1312, %v1293
      %1341 = vst.msk [vmem:[%s199 + $0xe0] sm:$0xff] %vm1312, %v1298
      %1342 = vst.msk [vmem:[%s199 + $0xe8] sm:$0xff] %vm1312, %v1301
      %1343 = vst.msk [vmem:[%s199 + $0xf0] sm:$0xff] %vm1312, %v1306
      %1344 = vst.msk [vmem:[%s199 + $0xf8] sm:$0xff] %vm1312, %v1309
      %s1345 = smul.u32 32, %s15
      %p1346 = scmp.lt.s32.totalorder %s1345, 63
      %s1347 = scalar_select %p1346, %s1345, 63
      %s1348 = smul.addr %s1347, 8
      %s1349 = scalar_lea.vmem %s4, %s1348
      // Predicated region
      $region37: #{icritic_forward.1} parent=35 // pred_check
        %p1350 = pneg %p122
      $region38: #{icritic_forward.1} parent=35 // pred_check_branch
        %1352 = sbr.rel (%p1350) target = $region40
      $region39: #{icritic_forward.1} parent=35 // pred_region
        %s1353 = smul.u32 32, %s15
      $region40: #{icritic_forward.1} parent=35 // pred_fallthru
        _
    $region36: #{icritic_forward.1} parent=5 // pred_fallthru
      _
    %p1354 = scmp.le.s32.totalorder 2, %s10
    // Predicated region
    $region41: #{icritic_forward.1} parent=5 // pred_check
      %p1355 = pneg %p1354
    $region42: #{icritic_forward.1} parent=5 // pred_check_branch
      %1357 = sbr.rel (%p1355) target = $region44
    $region43: #{icritic_forward.1} parent=5 // pred_region
      %s1358 = ssub.s32 %s10, 2
      // Predicated region
      $region45: #{icritic_forward.1} parent=43 // pred_check
        %p1359 = pneg %p128
      $region46: #{icritic_forward.1} parent=43 // pred_check_branch
        %1361 = sbr.rel (%p1359) target = $region48
      $region47: #{icritic_forward.1} parent=43 // pred_region
        %s1362 = smul.u32 32, %s16
        %p1363 = scmp.lt.s32.totalorder %s1362, 63
        %s1364 = scalar_select %p1363, %s1362, 63
        %s1365 = smul.addr %s1364, 8
        %s1366 = scalar_lea.vmem %s4, %s1365
      $region48: #{icritic_forward.1} parent=43 // pred_fallthru
        _
    $region44: #{icritic_forward.1} parent=5 // pred_fallthru
      _
  $region6: #{icritic_forward.1} parent=0 // loop_footer
    %s14 = sadd.s32 1, %s10
  $region7: #{icritic_forward.1} parent=0 // loop_footer_branch
    %9 = sbr.rel target = $region3
  $region8: #{icritic_forward.1} parent=0 // loop_exit
    _

</llo_original>
